<compile_context>
chip_gen: v5e
topology: v5e:2x2
jax: 0.10.0
libtpu: 0.0.40
codegen_flags: <defaults>
</compile_context>

<pallas_src>
import functools

import jax
import jax.numpy as jnp
from jax.experimental import pallas as pl
from jax.experimental.pallas import tpu as pltpu


def _round_up(x, m):
    return ((x + m - 1) // m) * m


def _round_down(x, m):
    return (x // m) * m


# --------------------------------------------------------------------------
# Kernels
# --------------------------------------------------------------------------
def cba_kernel(h_ref, s_ref, w1h_ref, w1s_ref, b1_ref, w2_ref, b2_ref, out_ref,
               *, tb, seq_len):
    """One grid step processes TB whole batches = TM = TB*Lp flattened rows.

    h_ref : (TM, H)   h rows (read once, reused for the final reduction)
    s_ref : (TM, S)   s rows
    w1h   : (H, CV)   weight_layer weight, h-half (resident)
    w1s   : (S, CV)   weight_layer weight, s-half (resident)
    b1    : (1, CV)
    w2    : (CV, 1)   score-layer weight (pre-transposed for matmul)
    b2    : (1,)      score-layer bias, SMEM scalar
    out   : (TB, H)
    """
    h = h_ref[...]                                     # (TM, H)
    s = s_ref[...]                                     # (TM, S)

    # Fused weight_layer on split weights -> no in-kernel (or wrapper) concat.
    z = (jnp.dot(h, w1h_ref[...], preferred_element_type=jnp.float32)
         + jnp.dot(s, w1s_ref[...], preferred_element_type=jnp.float32)
         + b1_ref[...])
    t = jnp.tanh(z)                                    # (TM, CV) -> EUP

    # score_layer on the MXU; bias is an SMEM scalar.
    score = (jnp.dot(t, w2_ref[...], preferred_element_type=jnp.float32)
             + b2_ref[0])                              # (TM, 1)

    # Softmax over the (size-1) last axis — faithful to the module; the
    # result is exactly 1.0 but is still computed.
    m = jnp.max(score, axis=-1, keepdims=True)
    e = jnp.exp(score - m)
    w = e / jnp.sum(e, axis=-1, keepdims=True)         # (TM, 1)

    # cv[b] = sum_l w[b*Lp + l] * h[b*Lp + l]  — reshape + sublane-sum (XLU),
    # padded L rows contribute exactly 0 (h rows are zero there).
    weighted = w * h                                   # (TM, H)
    hdim = weighted.shape[-1]
    cv = weighted.reshape(tb, seq_len, hdim).sum(axis=1)   # (TB, H)
    out_ref[...] = cv.astype(out_ref.dtype)


def segment_sum_kernel(h_ref, out_ref):
    # Degenerate-softmax fast path: normalized weights are identically 1.0,
    # so cv == sum over L of h. Pure memory-bound segment sum.
    out_ref[...] = jnp.sum(h_ref[...], axis=1).astype(out_ref.dtype)


# --------------------------------------------------------------------------
# Tiling / VMEM planning
# --------------------------------------------------------------------------
def _plan_tiles(B, L, H, S, CV, *, faithful):
    """Pick batches-per-step (tb), padded batch/seq sizes, and a VMEM budget."""
    Lp = _round_up(L, 8)

    try:
        vmem_cap = int(pltpu.get_tpu_info().vmem_capacity_bytes)
    except Exception:
        vmem_cap = 64 << 20            # v7x per-core size: smallest of all gens

    # Scoped-VMEM request: above the 16/32 MiB defaults, below physical.
    vmem_limit = max(32 << 20, min(int(0.75 * vmem_cap), 96 << 20))
    budget = int(0.55 * vmem_limit)    # working-set budget for tile selection

    row_bytes = 4 * (H + S if faithful else H)
    # ~2-8 MiB of row data per grid step reaches HBM roofline; aim ~4 MiB.
    target_rows = max(8, (4 << 20) // max(row_bytes, 1))
    tb = max(8, _round_down(target_rows // Lp, 8))
    tb = min(tb, _round_up(B, 8))              # never pad batch by more than one tile
    if B >= 16:                                # keep >= 2 grid steps (megacore / pipeline)
        tb = min(tb, max(8, _round_down(_round_up(B, 8) // 2, 8)))

    def working_set(tb_):
        tm = tb_ * Lp
        blocks = 2 * tm * row_bytes                               # double-buffered row inputs
        outb = 2 * tb_ * H * 4                                    # double-buffered output
        wts = 2 * ((H + S) * CV + 2 * CV + 8) * 4 if faithful else 0
        interm = (tm * (2 * CV + H) + 4 * tm) * 4 if faithful else tm * H * 4
        return blocks + outb + wts + interm

    while tb > 8 and working_set(tb) > budget:
        tb = max(8, _round_down(tb // 2, 8))

    Bp = _round_up(B, tb)
    return tb, Bp, Lp, vmem_limit


# --------------------------------------------------------------------------
# Wrappers
# --------------------------------------------------------------------------
def _segment_sum(h):
    """Fast path: cv == sum_L(h) (exactly equal to the module's output)."""
    B, L, H = h.shape
    tb, Bp, Lp, vmem_limit = _plan_tiles(B, L, H, 0, 0, faithful=False)
    if (Bp, Lp) != (B, L):
        h = jnp.pad(h, ((0, Bp - B), (0, Lp - L), (0, 0)))

    out = pl.pallas_call(
        segment_sum_kernel,
        out_shape=jax.ShapeDtypeStruct((Bp, H), jnp.float32),
        grid_spec=pltpu.PrefetchScalarGridSpec(
            num_scalar_prefetch=0,
            grid=(Bp // tb,),
            in_specs=[pl.BlockSpec((tb, Lp, H), lambda i: (i, 0, 0))],
            out_specs=pl.BlockSpec((tb, H), lambda i: (i, 0)),
        ),
        compiler_params=pltpu.CompilerParams(
            dimension_semantics=("parallel",),
            vmem_limit_bytes=vmem_limit),
    )(h)
    return out[:B]


def content_based_attention(h, s, params, *, assume_degenerate_softmax=False):
    """h: (B, L, H) f32, s: (B, L, S) f32 -> cv: (B, H) f32."""
    B, L, H = h.shape
    assert s.shape[:2] == (B, L)
    S = s.shape[-1]
    w1, b1, w2, b2 = params
    K, CV = w1.shape
    assert K == H + S

    if assume_degenerate_softmax:
        # softmax over the size-1 score axis is identically 1 => cv = sum_L(h).
        return _segment_sum(h)

    tb, Bp, Lp, vmem_limit = _plan_tiles(B, L, H, S, CV, faithful=True)

    # Zero-pad batch to a multiple of tb and L to a multiple of 8 (exact:
    # padded rows have h == 0, so w * h == 0 regardless of the score path).
    if (Bp, Lp) != (B, L):
        h = jnp.pad(h, ((0, Bp - B), (0, Lp - L), (0, 0)))
        s = jnp.pad(s, ((0, Bp - B), (0, Lp - L), (0, 0)))

    h2d = h.reshape(Bp * Lp, H)
    s2d = s.reshape(Bp * Lp, S)
    w1h = w1[:H]          # (H, CV)
    w1s = w1[H:]          # (S, CV)

    tm = tb * Lp
    kernel = functools.partial(cba_kernel, tb=tb, seq_len=Lp)

    out = pl.pallas_call(
        kernel,
        out_shape=jax.ShapeDtypeStruct((Bp, H), jnp.float32),
        grid_spec=pltpu.PrefetchScalarGridSpec(
            num_scalar_prefetch=0,
            grid=(Bp // tb,),
            in_specs=[
                pl.BlockSpec((tm, H), lambda i: (i, 0)),            # h rows (read once)
                pl.BlockSpec((tm, S), lambda i: (i, 0)),            # s rows
                pl.BlockSpec((H, CV), lambda i: (0, 0)),            # W1h (resident)
                pl.BlockSpec((S, CV), lambda i: (0, 0)),            # W1s (resident)
                pl.BlockSpec((1, CV), lambda i: (0, 0)),            # b1
                pl.BlockSpec((CV, 1), lambda i: (0, 0)),            # score weight
                pl.BlockSpec(memory_space=pltpu.MemorySpace.SMEM),  # b2 scalar
            ],
            out_specs=pl.BlockSpec((tb, H), lambda i: (i, 0)),
        ),
        compiler_params=pltpu.CompilerParams(
            dimension_semantics=("parallel",),
            vmem_limit_bytes=vmem_limit),
    )(h2d, s2d, w1h, w1s, b1, w2, b2)
    return out[:B]


# --------------------------------------------------------------------------
# Params / reference
# --------------------------------------------------------------------------
def init_params(key, h_size, s_size, cv_size):
    """Deterministic init mimicking nn.Linear defaults (uniform +/- 1/sqrt(fan_in))."""
    k1, k2, k3, k4 = jax.random.split(key, 4)
    fan1 = h_size + s_size
    bnd1 = 1.0 / jnp.sqrt(fan1)
    w1 = jax.random.uniform(k1, (fan1, cv_size), jnp.float32, -bnd1, bnd1)  # (K, CV)
    b1 = jax.random.uniform(k2, (1, cv_size), jnp.float32, -bnd1, bnd1)
    bnd2 = 1.0 / jnp.sqrt(cv_size)
    w2 = jax.random.uniform(k3, (cv_size, 1), jnp.float32, -bnd2, bnd2)     # (CV, 1)
    b2 = jax.random.uniform(k4, (1,), jnp.float32, -bnd2, bnd2)
    return w1, b1, w2, b2


def reference(h, s, params):
    """Pure-JAX mirror of the PyTorch forward."""
    w1, b1, w2, b2 = params
    x = jnp.concatenate([h, s], axis=-1)                       # (B, L, K)
    t = jnp.tanh(x @ w1 + b1)                                  # (B, L, CV)
    score = t @ w2 + b2                                        # (B, L, 1)
    nw = jax.nn.softmax(score, axis=-1)                        # size-1 axis -> ones
    cv = (jnp.swapaxes(nw, 1, 2) @ h)[:, 0, :]                 # (B, H)
    return cv


if __name__ == "__main__":
    B, L = 2, 8
    h_size, s_size, cv_size = 32, 32, 32

    key = jax.random.PRNGKey(0)
    kh, ks, kp = jax.random.split(key, 3)
    h = jax.random.normal(kh, (B, L, h_size), jnp.float32)
    s = jax.random.normal(ks, (B, L, s_size), jnp.float32)
    params = init_params(kp, h_size, s_size, cv_size)

    # Faithful path (full weight_layer/tanh/score/softmax math).
    cv = content_based_attention(h, s, params)
    cv = jax.block_until_ready(cv)

    # Degenerate-softmax fast path (segment sum of h), same output.
    cv_fast = content_based_attention(h, s, params, assume_degenerate_softmax=True)
    cv_fast = jax.block_until_ready(cv_fast)

    cv_ref = reference(h, s, params)
    assert cv.shape == (B, h_size)
    assert jnp.allclose(cv, cv_ref, atol=1e-5, rtol=1e-5), (
        f"max abs err {jnp.max(jnp.abs(cv - cv_ref))}")
    assert jnp.allclose(cv_fast, cv_ref, atol=1e-5, rtol=1e-5), (
        f"fast-path max abs err {jnp.max(jnp.abs(cv_fast - cv_ref))}")

    print("KERNEL_OK")
</pallas_src>

<mosaic_0001>
module attributes {stable_mosaic.version = 11 : i64} {
  func.func @cba_kernel(%arg0: i32, %arg1: memref<64x32xf32, #tpu.memory_space<vmem>>, %arg2: memref<64x32xf32, #tpu.memory_space<vmem>>, %arg3: memref<32x32xf32, #tpu.memory_space<vmem>>, %arg4: memref<32x32xf32, #tpu.memory_space<vmem>>, %arg5: memref<1x32xf32, #tpu.memory_space<vmem>>, %arg6: memref<32x1xf32, #tpu.memory_space<vmem>>, %arg7: memref<1xf32, #tpu.memory_space<smem>>, %arg8: memref<8x32xf32, #tpu.memory_space<vmem>>) attributes {dimension_semantics = [#tpu.dimension_semantics<parallel>], iteration_bounds = array<i64: 1>, scalar_prefetch = 0 : i64, scratch_operands = 0 : i64, tpu.core_type = #tpu.core_type<tc>, window_params = [{transform_indices = @transform_0, window_bounds = array<i64: 64, 32>}, {transform_indices = @transform_1, window_bounds = array<i64: 64, 32>}, {pipeline_mode = #tpu.pipeline_mode<synchronous>, transform_indices = @transform_2, window_bounds = array<i64: 32, 32>}, {pipeline_mode = #tpu.pipeline_mode<synchronous>, transform_indices = @transform_3, window_bounds = array<i64: 32, 32>}, {pipeline_mode = #tpu.pipeline_mode<synchronous>, transform_indices = @transform_4, window_bounds = array<i64: 1, 32>}, {pipeline_mode = #tpu.pipeline_mode<synchronous>, transform_indices = @transform_5, window_bounds = array<i64: 32, 1>}, {transform_indices = @transform_6, window_bounds = array<i64: 1>}, {transform_indices = @transform_7, window_bounds = array<i64: 8, 32>}]} {
    %c0 = arith.constant 0 : index
    %c0_0 = arith.constant 0 : index
    %0 = vector.load %arg1[%c0, %c0_0] : memref<64x32xf32, #tpu.memory_space<vmem>>, vector<64x32xf32>
    %c0_1 = arith.constant 0 : index
    %c0_2 = arith.constant 0 : index
    %1 = vector.load %arg2[%c0_1, %c0_2] : memref<64x32xf32, #tpu.memory_space<vmem>>, vector<64x32xf32>
    %c0_3 = arith.constant 0 : index
    %c0_4 = arith.constant 0 : index
    %2 = vector.load %arg3[%c0_3, %c0_4] : memref<32x32xf32, #tpu.memory_space<vmem>>, vector<32x32xf32>
    %cst = arith.constant dense<0.000000e+00> : vector<64x32xf32>
    %3 = tpu.matmul %0, %2, %cst {dimension_numbers = #tpu.dot_dimension_numbers<[1], [0], [0], [1], [0, 0, 1, 1], [], []>} : vector<64x32xf32>, vector<32x32xf32>, vector<64x32xf32> -> vector<64x32xf32>
    %c0_5 = arith.constant 0 : index
    %c0_6 = arith.constant 0 : index
    %4 = vector.load %arg4[%c0_5, %c0_6] : memref<32x32xf32, #tpu.memory_space<vmem>>, vector<32x32xf32>
    %cst_7 = arith.constant dense<0.000000e+00> : vector<64x32xf32>
    %5 = tpu.matmul %1, %4, %cst_7 {dimension_numbers = #tpu.dot_dimension_numbers<[1], [0], [0], [1], [0, 0, 1, 1], [], []>} : vector<64x32xf32>, vector<32x32xf32>, vector<64x32xf32> -> vector<64x32xf32>
    %6 = arith.addf %3, %5 : vector<64x32xf32>
    %c0_8 = arith.constant 0 : index
    %c0_9 = arith.constant 0 : index
    %7 = vector.load %arg5[%c0_8, %c0_9] : memref<1x32xf32, #tpu.memory_space<vmem>>, vector<1x32xf32>
    %8 = vector.broadcast %7 : vector<1x32xf32> to vector<64x32xf32>
    %9 = arith.addf %6, %8 : vector<64x32xf32>
    %10 = math.tanh %9 : vector<64x32xf32>
    %c0_10 = arith.constant 0 : index
    %c0_11 = arith.constant 0 : index
    %11 = vector.load %arg6[%c0_10, %c0_11] : memref<32x1xf32, #tpu.memory_space<vmem>>, vector<32x1xf32>
    %cst_12 = arith.constant dense<0.000000e+00> : vector<64x1xf32>
    %12 = tpu.matmul %10, %11, %cst_12 {dimension_numbers = #tpu.dot_dimension_numbers<[1], [0], [0], [1], [0, 0, 1, 1], [], []>} : vector<64x32xf32>, vector<32x1xf32>, vector<64x1xf32> -> vector<64x1xf32>
    %c0_13 = arith.constant 0 : index
    %13 = memref.load %arg7[%c0_13] : memref<1xf32, #tpu.memory_space<smem>>
    %14 = vector.broadcast %13 : f32 to vector<64x1xf32>
    %15 = arith.addf %12, %14 : vector<64x1xf32>
    %cst_14 = arith.constant dense<0xFF800000> : vector<64xf32>
    %16 = vector.multi_reduction <maximumf>, %15, %cst_14 [1] : vector<64x1xf32> to vector<64xf32>
    %17 = vector.shape_cast %16 : vector<64xf32> to vector<64x1xf32>
    %18 = arith.subf %15, %17 : vector<64x1xf32>
    %19 = math.exp %18 : vector<64x1xf32>
    %cst_15 = arith.constant dense<0.000000e+00> : vector<64xf32>
    %20 = vector.multi_reduction <add>, %19, %cst_15 [1] : vector<64x1xf32> to vector<64xf32>
    %21 = vector.shape_cast %20 : vector<64xf32> to vector<64x1xf32>
    %22 = arith.divf %19, %21 : vector<64x1xf32>
    %23 = vector.broadcast %22 : vector<64x1xf32> to vector<64x32xf32>
    %24 = arith.mulf %23, %0 : vector<64x32xf32>
    %25 = vector.shape_cast %24 : vector<64x32xf32> to vector<8x8x32xf32>
    %cst_16 = arith.constant dense<0.000000e+00> : vector<8x32xf32>
    %26 = vector.multi_reduction <add>, %25, %cst_16 [1] : vector<8x8x32xf32> to vector<8x32xf32>
    %c0_17 = arith.constant 0 : index
    %c0_18 = arith.constant 0 : index
    %27 = vector.load %arg8[%c0_17, %c0_18] : memref<8x32xf32, #tpu.memory_space<vmem>>, vector<8x32xf32>
    tpu.vector_store %arg8[%c0_17, %c0_18], %26 {strides = array<i32>} : memref<8x32xf32, #tpu.memory_space<vmem>>, vector<8x32xf32>,
    return
  }
  func.func @transform_0(%arg0: i32) -> (i32, i32) {
    %c0_i32 = arith.constant 0 : i32
    %c0_i32_0 = arith.constant 0 : i32
    return %arg0, %c0_i32 : i32, i32
  }
  func.func @transform_1(%arg0: i32) -> (i32, i32) {
    %c0_i32 = arith.constant 0 : i32
    %c0_i32_0 = arith.constant 0 : i32
    return %arg0, %c0_i32 : i32, i32
  }
  func.func @transform_2(%arg0: i32) -> (i32, i32) {
    %c0_i32 = arith.constant 0 : i32
    %c0_i32_0 = arith.constant 0 : i32
    %c0_i32_1 = arith.constant 0 : i32
    return %c0_i32, %c0_i32_0 : i32, i32
  }
  func.func @transform_3(%arg0: i32) -> (i32, i32) {
    %c0_i32 = arith.constant 0 : i32
    %c0_i32_0 = arith.constant 0 : i32
    %c0_i32_1 = arith.constant 0 : i32
    return %c0_i32, %c0_i32_0 : i32, i32
  }
  func.func @transform_4(%arg0: i32) -> (i32, i32) {
    %c0_i32 = arith.constant 0 : i32
    %c0_i32_0 = arith.constant 0 : i32
    %c0_i32_1 = arith.constant 0 : i32
    return %c0_i32, %c0_i32_0 : i32, i32
  }
  func.func @transform_5(%arg0: i32) -> (i32, i32) {
    %c0_i32 = arith.constant 0 : i32
    %c0_i32_0 = arith.constant 0 : i32
    %c0_i32_1 = arith.constant 0 : i32
    return %c0_i32, %c0_i32_0 : i32, i32
  }
  func.func @transform_6(%arg0: i32) -> i32 {
    %c0_i32 = arith.constant 0 : i32
    %c0_i32_0 = arith.constant 0 : i32
    return %c0_i32 : i32
  }
  func.func @transform_7(%arg0: i32) -> (i32, i32) {
    %c0_i32 = arith.constant 0 : i32
    %c0_i32_0 = arith.constant 0 : i32
    return %arg0, %c0_i32 : i32, i32
  }
}

</mosaic_0001>

<llo_original>
// kernel: tpu_custom_call.1
$region0: #{tpu_custom_call.1}
  #allocation0 [shape = 'u32[]', space=smem, size = 0x4, offset = 0x4, fixed_abs, tag = 'smem constant byte address 0x4 - core index']
  #allocation1 [shape = 'u32[72,128]{1,0:T(1,128)}', space=vmem, size = 0x9000, scoped, tag = 'internal scratch']
  #allocation2 [shape = 'f32[1]{0:T(128)S(6)}', space=smem, size = 0x200, scoped, tag = 'scoped memory for tpu_custom_call.1']
  %s0 = inlined_call_operand.vmem [shape: f32[64,32], index: 0, kind: input, shape index: {}]
  %s1 = inlined_call_operand.vmem [shape: f32[64,32], index: 1, kind: input, shape index: {}]
  %s2 = inlined_call_operand.vmem [shape: f32[32,32], index: 2, kind: input, shape index: {}]
  %s3 = inlined_call_operand.vmem [shape: f32[32,32], index: 3, kind: input, shape index: {}]
  %s4 = inlined_call_operand.vmem [shape: f32[1,32], index: 4, kind: input, shape index: {}]
  %s5 = inlined_call_operand.vmem [shape: f32[32,1], index: 5, kind: input, shape index: {}]
  %s6 = inlined_call_operand.<no memory space> [shape: f32[1], index: 6, kind: input, shape index: {}]
  %s7 = inlined_call_operand.hbm [shape: f32[8,32], index: 7, kind: output, shape index: {}]
  %s8 = sld [smem:[#allocation0]]
  $region38: #{tpu_custom_call.1} parent=0
    _
  %s10 = ssub.s32 1, %s8
  %s11 = scalar_select 0, %s10, %s8
  %12 = sst [smem:[#allocation2]] %s6
  $region1: #{tpu_custom_call.1} parent=0
    #allocation3 [shape = 'u8[4096]{0}', space=vmem, size = 0x1000, scoped, tag = 'output window, operand 0, single buffered']
    #allocation4 [shape = 's32[1]{0}', space=sflag, size = 0x4, scoped, tag = 'scoped memory for tpu_custom_call.1']
    %13 = vsyncpa [#allocation4], 0
    // Predicated region
    $region2: #{tpu_custom_call.1} parent=1 // pred_check
      _
    $region3: #{tpu_custom_call.1} parent=1 // pred_check_branch
      %15 = sbr.rel (0) target = $region5
    $region4: #{tpu_custom_call.1} parent=1 // pred_region
      _
    $region5: #{tpu_custom_call.1} parent=1 // pred_fallthru
      _
    // Predicated region
    $region6: #{tpu_custom_call.1} parent=1 // pred_check
      _
    $region7: #{tpu_custom_call.1} parent=1 // pred_check_branch
      %17 = sbr.rel (0) target = $region9
    $region8: #{tpu_custom_call.1} parent=1 // pred_region
      _
    $region9: #{tpu_custom_call.1} parent=1 // pred_fallthru
      _
    // Predicated region
    $region10: #{tpu_custom_call.1} parent=1 // pred_check
      _
    $region11: #{tpu_custom_call.1} parent=1 // pred_check_branch
      %19 = sbr.rel (0) target = $region13
    $region12: #{tpu_custom_call.1} parent=1 // pred_region
      _
    $region13: #{tpu_custom_call.1} parent=1 // pred_fallthru
      _
    // Predicated region
    $region14: #{tpu_custom_call.1} parent=1 // pred_check
      _
    $region15: #{tpu_custom_call.1} parent=1 // pred_check_branch
      %21 = sbr.rel (0) target = $region17
    $region16: #{tpu_custom_call.1} parent=1 // pred_region
      _
    $region17: #{tpu_custom_call.1} parent=1 // pred_fallthru
      _
    // Predicated region
    $region18: #{tpu_custom_call.1} parent=1 // pred_check
      _
    $region19: #{tpu_custom_call.1} parent=1 // pred_check_branch
      %23 = sbr.rel (0) target = $region21
    $region20: #{tpu_custom_call.1} parent=1 // pred_region
      _
    $region21: #{tpu_custom_call.1} parent=1 // pred_fallthru
      _
    // Predicated region
    $region22: #{tpu_custom_call.1} parent=1 // pred_check
      _
    $region23: #{tpu_custom_call.1} parent=1 // pred_check_branch
      %25 = sbr.rel (0) target = $region25
    $region24: #{tpu_custom_call.1} parent=1 // pred_region
      _
    $region25: #{tpu_custom_call.1} parent=1 // pred_fallthru
      _
    // Predicated region
    $region26: #{tpu_custom_call.1} parent=1 // pred_check
      _
    $region27: #{tpu_custom_call.1} parent=1 // pred_check_branch
      %27 = sbr.rel (0) target = $region29
    $region28: #{tpu_custom_call.1} parent=1 // pred_region
      _
    $region29: #{tpu_custom_call.1} parent=1 // pred_fallthru
      _
    %v28 = vld [vmem:[%s0] sm:$0xff]
    %v29 = vld [vmem:[%s0 + $0x8] sm:$0xff]
    %v30 = vld [vmem:[%s0 + $0x10] sm:$0xff]
    %v31 = vld [vmem:[%s0 + $0x18] sm:$0xff]
    %v32 = vld [vmem:[%s0 + $0x20] sm:$0xff]
    %v33 = vld [vmem:[%s0 + $0x28] sm:$0xff]
    %v34 = vld [vmem:[%s0 + $0x30] sm:$0xff]
    %v35 = vld [vmem:[%s0 + $0x38] sm:$0xff]
    %v36 = vld [vmem:[%s1] sm:$0xff]
    %v37 = vld [vmem:[%s1 + $0x8] sm:$0xff]
    %v38 = vld [vmem:[%s1 + $0x10] sm:$0xff]
    %v39 = vld [vmem:[%s1 + $0x18] sm:$0xff]
    %v40 = vld [vmem:[%s1 + $0x20] sm:$0xff]
    %v41 = vld [vmem:[%s1 + $0x28] sm:$0xff]
    %v42 = vld [vmem:[%s1 + $0x30] sm:$0xff]
    %v43 = vld [vmem:[%s1 + $0x38] sm:$0xff]
    %v44 = vld [vmem:[%s2] sm:$0xff]
    %v45 = vld [vmem:[%s2 + $0x8] sm:$0xff]
    %v46 = vld [vmem:[%s2 + $0x10] sm:$0xff]
    %v47 = vld [vmem:[%s2 + $0x18] sm:$0xff]
    %v48 = vld [vmem:[%s3] sm:$0xff]
    %v49 = vld [vmem:[%s3 + $0x8] sm:$0xff]
    %v50 = vld [vmem:[%s3 + $0x10] sm:$0xff]
    %v51 = vld [vmem:[%s3 + $0x18] sm:$0xff]
    %vm52 = vcmask 261120
    %v54 = vsel %vm52, %v36, 0
    %v57 = vsel %vm52, %v37, 0
    %v60 = vsel %vm52, %v38, 0
    %v63 = vsel %vm52, %v39, 0
    %v66 = vsel %vm52, %v40, 0
    %v69 = vsel %vm52, %v41, 0
    %v72 = vsel %vm52, %v42, 0
    %v75 = vsel %vm52, %v43, 0
    %77 = vmatpush.msra.mxu0 0.0
    %78 = vmatpush.msra.mxu0 0.0
    %79 = vmatpush.msra.mxu0 0.0
    %80 = vmatpush.msra.mxu0 0.0
    %81 = vmatpush.msra.mxu0 0.0
    %82 = vmatpush.msra.mxu0 0.0
    %83 = vmatpush.msra.mxu0 0.0
    %84 = vmatpush.msra.mxu0 0.0
    %85 = vmatpush.msra.mxu0 0.0
    %86 = vmatpush.msra.mxu0 0.0
    %87 = vmatpush.msra.mxu0 0.0
    %88 = vmatpush.msra.mxu0 0.0
    %89 = vmatpush.msra.mxu0 %v51
    %90 = vmatpush.msra.mxu0 %v50
    %91 = vmatpush.msra.mxu0 %v49
    %92 = vmatpush.msra.mxu0 %v48
    %93 = vmatmul.f32.gmra.mxu0 %v54
    %v94 = vpop.f32.mrf.mxu0
    %v95 = vadd.f32 0.0, %v94
    %96 = vmatmul.f32.gmra.mxu0 %v57
    %v97 = vpop.f32.mrf.mxu0
    %v98 = vadd.f32 0.0, %v97
    %99 = vmatmul.f32.gmra.mxu0 %v60
    %v100 = vpop.f32.mrf.mxu0
    %v101 = vadd.f32 0.0, %v100
    %102 = vmatmul.f32.gmra.mxu0 %v63
    %v103 = vpop.f32.mrf.mxu0
    %v104 = vadd.f32 0.0, %v103
    %105 = vmatmul.f32.gmra.mxu0 %v66
    %v106 = vpop.f32.mrf.mxu0
    %v107 = vadd.f32 0.0, %v106
    %108 = vmatmul.f32.gmra.mxu0 %v69
    %v109 = vpop.f32.mrf.mxu0
    %v110 = vadd.f32 0.0, %v109
    %111 = vmatmul.f32.gmra.mxu0 %v72
    %v112 = vpop.f32.mrf.mxu0
    %v113 = vadd.f32 0.0, %v112
    %114 = vmatmul.f32.gmra.mxu0 %v75
    %v115 = vpop.f32.mrf.mxu0
    %v116 = vadd.f32 0.0, %v115
    %117 = vdwg.mxu0
    %v119 = vsel %vm52, %v28, 0
    %v122 = vsel %vm52, %v29, 0
    %v125 = vsel %vm52, %v30, 0
    %v128 = vsel %vm52, %v31, 0
    %v131 = vsel %vm52, %v32, 0
    %v134 = vsel %vm52, %v33, 0
    %v137 = vsel %vm52, %v34, 0
    %v140 = vsel %vm52, %v35, 0
    %142 = vmatpush.msra.mxu0 0.0
    %143 = vmatpush.msra.mxu0 0.0
    %144 = vmatpush.msra.mxu0 0.0
    %145 = vmatpush.msra.mxu0 0.0
    %146 = vmatpush.msra.mxu0 0.0
    %147 = vmatpush.msra.mxu0 0.0
    %148 = vmatpush.msra.mxu0 0.0
    %149 = vmatpush.msra.mxu0 0.0
    %150 = vmatpush.msra.mxu0 0.0
    %151 = vmatpush.msra.mxu0 0.0
    %152 = vmatpush.msra.mxu0 0.0
    %153 = vmatpush.msra.mxu0 0.0
    %154 = vmatpush.msra.mxu0 %v47
    %155 = vmatpush.msra.mxu0 %v46
    %156 = vmatpush.msra.mxu0 %v45
    %157 = vmatpush.msra.mxu0 %v44
    %158 = vmatmul.f32.gmra.mxu0 %v119
    %v159 = vpop.f32.mrf.mxu0
    %v160 = vadd.f32 %v95, %v159
    %161 = vmatmul.f32.gmra.mxu0 %v122
    %v162 = vpop.f32.mrf.mxu0
    %v163 = vadd.f32 %v98, %v162
    %164 = vmatmul.f32.gmra.mxu0 %v125
    %v165 = vpop.f32.mrf.mxu0
    %v166 = vadd.f32 %v101, %v165
    %167 = vmatmul.f32.gmra.mxu0 %v128
    %v168 = vpop.f32.mrf.mxu0
    %v169 = vadd.f32 %v104, %v168
    %170 = vmatmul.f32.gmra.mxu0 %v131
    %v171 = vpop.f32.mrf.mxu0
    %v172 = vadd.f32 %v107, %v171
    %173 = vmatmul.f32.gmra.mxu0 %v134
    %v174 = vpop.f32.mrf.mxu0
    %v175 = vadd.f32 %v110, %v174
    %176 = vmatmul.f32.gmra.mxu0 %v137
    %v177 = vpop.f32.mrf.mxu0
    %v178 = vadd.f32 %v113, %v177
    %179 = vmatmul.f32.gmra.mxu0 %v140
    %v180 = vpop.f32.mrf.mxu0
    %v181 = vadd.f32 %v116, %v180
    %182 = vdwg.mxu0
    %v183 = vld [vmem:[%s4] sm:$0x1]
    %v185 = vperm.slane %v183, 0
    %v187 = vadd.f32 %v160, %v185
    %v188 = vadd.f32 %v163, %v185
    %v189 = vadd.f32 %v166, %v185
    %v190 = vadd.f32 %v169, %v185
    %v191 = vadd.f32 %v172, %v185
    %v192 = vadd.f32 %v175, %v185
    %v193 = vadd.f32 %v178, %v185
    %v194 = vadd.f32 %v181, %v185
    %v195 = vtanh.pop %v187
    %v196 = vtanh.pop %v188
    %v197 = vtanh.pop %v189
    %v198 = vtanh.pop %v190
    %v199 = vtanh.pop %v191
    %v200 = vtanh.pop %v192
    %v201 = vtanh.pop %v193
    %v202 = vtanh.pop %v194
    %v203 = vld [vmem:[%s5] sm:$0xff]
    %v204 = vld [vmem:[%s5 + $0x8] sm:$0xff]
    %v205 = vld [vmem:[%s5 + $0x10] sm:$0xff]
    %v206 = vld [vmem:[%s5 + $0x18] sm:$0xff]
    %s207 = sld [smem:[#allocation2]]
    %v208 = vstv %s207
    %v210 = vsel %vm52, %v195, 0
    %v213 = vsel %vm52, %v196, 0
    %v216 = vsel %vm52, %v197, 0
    %v219 = vsel %vm52, %v198, 0
    %v222 = vsel %vm52, %v199, 0
    %v225 = vsel %vm52, %v200, 0
    %v228 = vsel %vm52, %v201, 0
    %v231 = vsel %vm52, %v202, 0
    %233 = vmatpush.msra.mxu0 0.0
    %234 = vmatpush.msra.mxu0 0.0
    %235 = vmatpush.msra.mxu0 0.0
    %236 = vmatpush.msra.mxu0 0.0
    %237 = vmatpush.msra.mxu0 0.0
    %238 = vmatpush.msra.mxu0 0.0
    %239 = vmatpush.msra.mxu0 0.0
    %240 = vmatpush.msra.mxu0 0.0
    %241 = vmatpush.msra.mxu0 0.0
    %242 = vmatpush.msra.mxu0 0.0
    %243 = vmatpush.msra.mxu0 0.0
    %244 = vmatpush.msra.mxu0 0.0
    %245 = vmatpush.msra.mxu0 %v206
    %246 = vmatpush.msra.mxu0 %v205
    %247 = vmatpush.msra.mxu0 %v204
    %248 = vmatpush.msra.mxu0 %v203
    %249 = vmatmul.f32.gmra.mxu0 %v210
    %v250 = vpop.f32.mrf.mxu0
    %v251 = vadd.f32 %v208, %v250
    %252 = vmatmul.f32.gmra.mxu0 %v213
    %v253 = vpop.f32.mrf.mxu0
    %v254 = vadd.f32 %v208, %v253
    %255 = vmatmul.f32.gmra.mxu0 %v216
    %v256 = vpop.f32.mrf.mxu0
    %v257 = vadd.f32 %v208, %v256
    %258 = vmatmul.f32.gmra.mxu0 %v219
    %v259 = vpop.f32.mrf.mxu0
    %v260 = vadd.f32 %v208, %v259
    %261 = vmatmul.f32.gmra.mxu0 %v222
    %v262 = vpop.f32.mrf.mxu0
    %v263 = vadd.f32 %v208, %v262
    %264 = vmatmul.f32.gmra.mxu0 %v225
    %v265 = vpop.f32.mrf.mxu0
    %v266 = vadd.f32 %v208, %v265
    %267 = vmatmul.f32.gmra.mxu0 %v228
    %v268 = vpop.f32.mrf.mxu0
    %v269 = vadd.f32 %v208, %v268
    %270 = vmatmul.f32.gmra.mxu0 %v231
    %v271 = vpop.f32.mrf.mxu0
    %v272 = vadd.f32 %v208, %v271
    %273 = vdwg.mxu0
    %v274 = vsub.f32 %v251, %v251
    %v275 = vsub.f32 %v254, %v254
    %v276 = vsub.f32 %v257, %v257
    %v277 = vsub.f32 %v260, %v260
    %v278 = vsub.f32 %v263, %v263
    %v279 = vsub.f32 %v266, %v266
    %v280 = vsub.f32 %v269, %v269
    %v281 = vsub.f32 %v272, %v272
    %v282 = vmul.f32 %v274, 1.442695
    %v283 = vpow.pop %v282
    %v284 = vmul.f32 %v275, 1.442695
    %v285 = vpow.pop %v284
    %v286 = vmul.f32 %v276, 1.442695
    %v287 = vpow.pop %v286
    %v288 = vmul.f32 %v277, 1.442695
    %v289 = vpow.pop %v288
    %v290 = vmul.f32 %v278, 1.442695
    %v291 = vpow.pop %v290
    %v292 = vmul.f32 %v279, 1.442695
    %v293 = vpow.pop %v292
    %v294 = vmul.f32 %v280, 1.442695
    %v295 = vpow.pop %v294
    %v296 = vmul.f32 %v281, 1.442695
    %v297 = vpow.pop %v296
    %v298 = vadd.f32 %v283, 0.0
    %v299 = vadd.f32 %v285, 0.0
    %v300 = vadd.f32 %v287, 0.0
    %v301 = vadd.f32 %v289, 0.0
    %v302 = vadd.f32 %v291, 0.0
    %v303 = vadd.f32 %v293, 0.0
    %v304 = vadd.f32 %v295, 0.0
    %v305 = vadd.f32 %v297, 0.0
    %v306 = vrcp.pop %v298
    %v307 = vmul.f32 %v298, %v306
    %v308 = vsub.f32 1.0, %v307
    %v309 = vmul.f32 %v306, %v308
    %v310 = vadd.f32 %v306, %v309
    %vm311 = vweird.f32 %v298
    %vm312 = vweird.f32 %v306
    %vm313 = vmor %vm311, %vm312
    %v314 = vsel %vm313, %v306, %v310
    %v315 = vand.u32 2147483647, %v298
    %vm316 = vcmp.eq.f32.partialorder %v315, 8.507059e+37
    %v317 = vand.u32 %v298, 2147483648
    %v318 = vor.u32 1.1754944e-38, %v317
    %v319 = vsel %vm316, %v318, %v314
    %v320 = vmul.f32 %v283, %v319
    %v321 = vrcp.pop %v299
    %v322 = vmul.f32 %v299, %v321
    %v323 = vsub.f32 1.0, %v322
    %v324 = vmul.f32 %v321, %v323
    %v325 = vadd.f32 %v321, %v324
    %vm326 = vweird.f32 %v299
    %vm327 = vweird.f32 %v321
    %vm328 = vmor %vm326, %vm327
    %v329 = vsel %vm328, %v321, %v325
    %v330 = vand.u32 2147483647, %v299
    %vm331 = vcmp.eq.f32.partialorder %v330, 8.507059e+37
    %v332 = vand.u32 %v299, 2147483648
    %v333 = vor.u32 1.1754944e-38, %v332
    %v334 = vsel %vm331, %v333, %v329
    %v335 = vmul.f32 %v285, %v334
    %v336 = vrcp.pop %v300
    %v337 = vmul.f32 %v300, %v336
    %v338 = vsub.f32 1.0, %v337
    %v339 = vmul.f32 %v336, %v338
    %v340 = vadd.f32 %v336, %v339
    %vm341 = vweird.f32 %v300
    %vm342 = vweird.f32 %v336
    %vm343 = vmor %vm341, %vm342
    %v344 = vsel %vm343, %v336, %v340
    %v345 = vand.u32 2147483647, %v300
    %vm346 = vcmp.eq.f32.partialorder %v345, 8.507059e+37
    %v347 = vand.u32 %v300, 2147483648
    %v348 = vor.u32 1.1754944e-38, %v347
    %v349 = vsel %vm346, %v348, %v344
    %v350 = vmul.f32 %v287, %v349
    %v351 = vrcp.pop %v301
    %v352 = vmul.f32 %v301, %v351
    %v353 = vsub.f32 1.0, %v352
    %v354 = vmul.f32 %v351, %v353
    %v355 = vadd.f32 %v351, %v354
    %vm356 = vweird.f32 %v301
    %vm357 = vweird.f32 %v351
    %vm358 = vmor %vm356, %vm357
    %v359 = vsel %vm358, %v351, %v355
    %v360 = vand.u32 2147483647, %v301
    %vm361 = vcmp.eq.f32.partialorder %v360, 8.507059e+37
    %v362 = vand.u32 %v301, 2147483648
    %v363 = vor.u32 1.1754944e-38, %v362
    %v364 = vsel %vm361, %v363, %v359
    %v365 = vmul.f32 %v289, %v364
    %v366 = vrcp.pop %v302
    %v367 = vmul.f32 %v302, %v366
    %v368 = vsub.f32 1.0, %v367
    %v369 = vmul.f32 %v366, %v368
    %v370 = vadd.f32 %v366, %v369
    %vm371 = vweird.f32 %v302
    %vm372 = vweird.f32 %v366
    %vm373 = vmor %vm371, %vm372
    %v374 = vsel %vm373, %v366, %v370
    %v375 = vand.u32 2147483647, %v302
    %vm376 = vcmp.eq.f32.partialorder %v375, 8.507059e+37
    %v377 = vand.u32 %v302, 2147483648
    %v378 = vor.u32 1.1754944e-38, %v377
    %v379 = vsel %vm376, %v378, %v374
    %v380 = vmul.f32 %v291, %v379
    %v381 = vrcp.pop %v303
    %v382 = vmul.f32 %v303, %v381
    %v383 = vsub.f32 1.0, %v382
    %v384 = vmul.f32 %v381, %v383
    %v385 = vadd.f32 %v381, %v384
    %vm386 = vweird.f32 %v303
    %vm387 = vweird.f32 %v381
    %vm388 = vmor %vm386, %vm387
    %v389 = vsel %vm388, %v381, %v385
    %v390 = vand.u32 2147483647, %v303
    %vm391 = vcmp.eq.f32.partialorder %v390, 8.507059e+37
    %v392 = vand.u32 %v303, 2147483648
    %v393 = vor.u32 1.1754944e-38, %v392
    %v394 = vsel %vm391, %v393, %v389
    %v395 = vmul.f32 %v293, %v394
    %v396 = vrcp.pop %v304
    %v397 = vmul.f32 %v304, %v396
    %v398 = vsub.f32 1.0, %v397
    %v399 = vmul.f32 %v396, %v398
    %v400 = vadd.f32 %v396, %v399
    %vm401 = vweird.f32 %v304
    %vm402 = vweird.f32 %v396
    %vm403 = vmor %vm401, %vm402
    %v404 = vsel %vm403, %v396, %v400
    %v405 = vand.u32 2147483647, %v304
    %vm406 = vcmp.eq.f32.partialorder %v405, 8.507059e+37
    %v407 = vand.u32 %v304, 2147483648
    %v408 = vor.u32 1.1754944e-38, %v407
    %v409 = vsel %vm406, %v408, %v404
    %v410 = vmul.f32 %v295, %v409
    %v411 = vrcp.pop %v305
    %v412 = vmul.f32 %v305, %v411
    %v413 = vsub.f32 1.0, %v412
    %v414 = vmul.f32 %v411, %v413
    %v415 = vadd.f32 %v411, %v414
    %vm416 = vweird.f32 %v305
    %vm417 = vweird.f32 %v411
    %vm418 = vmor %vm416, %vm417
    %v419 = vsel %vm418, %v411, %v415
    %v420 = vand.u32 2147483647, %v305
    %vm421 = vcmp.eq.f32.partialorder %v420, 8.507059e+37
    %v422 = vand.u32 %v305, 2147483648
    %v423 = vor.u32 1.1754944e-38, %v422
    %v424 = vsel %vm421, %v423, %v419
    %v425 = vmul.f32 %v297, %v424
    %427 = vset.pattern.permute.xlu0 0
    %428 = vperm.xlu0 %427, %v320
    %v429 = vpop.permute.xlu0 %428
    %432 = vset.pattern.permute.xlu0 0
    %433 = vperm.xlu0 %432, %v335
    %v434 = vpop.permute.xlu0 %433
    %437 = vset.pattern.permute.xlu0 0
    %438 = vperm.xlu0 %437, %v350
    %v439 = vpop.permute.xlu0 %438
    %442 = vset.pattern.permute.xlu0 0
    %443 = vperm.xlu0 %442, %v365
    %v444 = vpop.permute.xlu0 %443
    %447 = vset.pattern.permute.xlu0 0
    %448 = vperm.xlu0 %447, %v380
    %v449 = vpop.permute.xlu0 %448
    %452 = vset.pattern.permute.xlu0 0
    %453 = vperm.xlu0 %452, %v395
    %v454 = vpop.permute.xlu0 %453
    %457 = vset.pattern.permute.xlu0 0
    %458 = vperm.xlu0 %457, %v410
    %v459 = vpop.permute.xlu0 %458
    %462 = vset.pattern.permute.xlu0 0
    %463 = vperm.xlu0 %462, %v425
    %v464 = vpop.permute.xlu0 %463
    %v466 = vmul.f32 %v429, %v28
    %v467 = vmul.f32 %v434, %v29
    %v468 = vmul.f32 %v439, %v30
    %v469 = vmul.f32 %v444, %v31
    %v470 = vmul.f32 %v449, %v32
    %v471 = vmul.f32 %v454, %v33
    %v472 = vmul.f32 %v459, %v34
    %v473 = vmul.f32 %v464, %v35
    %v474 = vsel %vm52, %v466, 0.0
    %v475 = vrot.slane %v474, 4
    %v476 = vadd.f32 %v474, %v475
    %v477 = vrot.slane %v476, 2
    %v478 = vadd.f32 %v476, %v477
    %v479 = vrot.slane %v478, 1
    %v480 = vadd.f32 %v478, %v479
    %v481 = vsel %vm52, %v467, 0.0
    %v482 = vrot.slane %v481, 4
    %v483 = vadd.f32 %v481, %v482
    %v484 = vrot.slane %v483, 2
    %v485 = vadd.f32 %v483, %v484
    %v486 = vrot.slane %v485, 1
    %v487 = vadd.f32 %v485, %v486
    %v488 = vsel %vm52, %v468, 0.0
    %v489 = vrot.slane %v488, 4
    %v490 = vadd.f32 %v488, %v489
    %v491 = vrot.slane %v490, 2
    %v492 = vadd.f32 %v490, %v491
    %v493 = vrot.slane %v492, 1
    %v494 = vadd.f32 %v492, %v493
    %v495 = vsel %vm52, %v469, 0.0
    %v496 = vrot.slane %v495, 4
    %v497 = vadd.f32 %v495, %v496
    %v498 = vrot.slane %v497, 2
    %v499 = vadd.f32 %v497, %v498
    %v500 = vrot.slane %v499, 1
    %v501 = vadd.f32 %v499, %v500
    %v502 = vsel %vm52, %v470, 0.0
    %v503 = vrot.slane %v502, 4
    %v504 = vadd.f32 %v502, %v503
    %v505 = vrot.slane %v504, 2
    %v506 = vadd.f32 %v504, %v505
    %v507 = vrot.slane %v506, 1
    %v508 = vadd.f32 %v506, %v507
    %v509 = vsel %vm52, %v471, 0.0
    %v510 = vrot.slane %v509, 4
    %v511 = vadd.f32 %v509, %v510
    %v512 = vrot.slane %v511, 2
    %v513 = vadd.f32 %v511, %v512
    %v514 = vrot.slane %v513, 1
    %v515 = vadd.f32 %v513, %v514
    %v516 = vsel %vm52, %v472, 0.0
    %v517 = vrot.slane %v516, 4
    %v518 = vadd.f32 %v516, %v517
    %v519 = vrot.slane %v518, 2
    %v520 = vadd.f32 %v518, %v519
    %v521 = vrot.slane %v520, 1
    %v522 = vadd.f32 %v520, %v521
    %v523 = vsel %vm52, %v473, 0.0
    %v524 = vrot.slane %v523, 4
    %v525 = vadd.f32 %v523, %v524
    %v526 = vrot.slane %v525, 2
    %v527 = vadd.f32 %v525, %v526
    %v528 = vrot.slane %v527, 1
    %v529 = vadd.f32 %v527, %v528
    %vm538 = vcmask 1041409
    %v539 = vsel %vm538, %v487, %v480
    %vm540 = vcmask 1042434
    %v541 = vsel %vm540, %v494, %v539
    %vm542 = vcmask 1043459
    %v543 = vsel %vm542, %v501, %v541
    %vm544 = vcmask 1044484
    %v545 = vsel %vm544, %v508, %v543
    %vm546 = vcmask 1045509
    %v547 = vsel %vm546, %v515, %v545
    %vm548 = vcmask 1046534
    %v549 = vsel %vm548, %v522, %v547
    %vm550 = vcmask 1047559
    %v551 = vsel %vm550, %v529, %v549
    %553 = vst.msk [vmem:[#allocation3] sm:$0xff] %vm52, %v551
    // Predicated region
    $region30: #{tpu_custom_call.1} parent=1 // pred_check
      _
    $region31: #{tpu_custom_call.1} parent=1 // pred_check_branch
      %555 = sbr.rel (0) target = $region33
    $region32: #{tpu_custom_call.1} parent=1 // pred_region
      %557 = vsyncadd [#allocation4], 0
      %s559 = sshll.u32 [#allocation3], 4
      %s560 = int_to_ptr.vmem [resolvable:$true] %s559
      %s561 = sshll.u32 %s7, 4
      %s562 = int_to_ptr.hbm [resolvable:$true] %s561
      %564 = dma.vmem_to_hbm [thread:$0]  %s560, 128, %s562, [#allocation4]
    $region33: #{tpu_custom_call.1} parent=1 // pred_fallthru
      _
    // Predicated region
    $region34: #{tpu_custom_call.1} parent=1 // pred_check
      _
    $region35: #{tpu_custom_call.1} parent=1 // pred_check_branch
      %566 = sbr.rel (0) target = $region37
    $region36: #{tpu_custom_call.1} parent=1 // pred_region
      %568 = dma.done [#allocation4], 128
    $region37: #{tpu_custom_call.1} parent=1 // pred_fallthru
      _
    %569 = vsyncpa [#allocation4], 1

</llo_original>
